<compile_context>
chip_gen: v5e
topology: v5e:2x2
jax: 0.10.0
libtpu: 0.0.40
codegen_flags: <defaults>
</compile_context>

<pallas_src>
import jax
import jax.numpy as jnp
from jax.experimental import pallas as pl
from jax.experimental.pallas import tpu as pltpu

IN_DIM = 1000
HID_DIM = 500
OUT_DIM = 100
OUT_PAD = 128   # 100 padded to a lane multiple -> unmasked MXU N tile + lane-dense store


def _round_up(a, m):
    return (a + m - 1) // m * m


def fused_mlp_kernel(x_ref, w_ref, b_ref, o_ref):
    """One fused affine layer: [tb, 1000] @ [1000, 128] + [1, 128]."""
    x = x_ref[...]
    if x.dtype != w_ref.dtype:
        # In-kernel cast for the bf16 weight path: x stays f32 in HBM, so the
        # cast costs no extra HBM traffic (it happens on the VMEM tile).
        x = x.astype(w_ref.dtype)
    y = jnp.dot(x, w_ref[...], preferred_element_type=jnp.float32) + b_ref[...]
    o_ref[...] = y.astype(o_ref.dtype)


def _choose_batch_tile(B, batch_tile):
    batch_tile = max(8, _round_up(batch_tile, 8))
    b8 = _round_up(B, 8)
    if B >= 16:
        # Guarantee >= 2 grid steps so the "parallel" batch axis can actually
        # shard across both TensorCores on v7x.
        half = _round_up((b8 + 1) // 2, 8)
        return min(batch_tile, half)
    return min(batch_tile, b8)


def simple_model_forward(x, wc, bc, *, batch_tile=512, return_padded=False):
    """Forward pass of SimpleModel.

    x  : [B, 1000] f32 (kept f32 in HBM; never cast/padded in the wrapper).
    wc : [1000, 128] fused+padded weight from pack_params (f32 or bf16).
    bc : [1, 128] fused+padded bias (f32).
    Returns [B, 100] f32 (or the [B_padded, 128] lane-padded slab if
    return_padded=True, for consumers that tolerate padding).
    """
    B = x.shape[0]
    assert x.shape[1] == IN_DIM

    tb = _choose_batch_tile(B, batch_tile)
    padded_B = _round_up(B, tb)
    xp = x
    if padded_B != B:
        xp = jnp.pad(xp, ((0, padded_B - B), (0, 0)))

    grid = (padded_B // tb,)

    w_itemsize = jnp.dtype(wc.dtype).itemsize
    x_itemsize = jnp.dtype(xp.dtype).itemsize

    flops = 2 * padded_B * IN_DIM * OUT_PAD
    bytes_accessed = (
        padded_B * IN_DIM * x_itemsize      # x
        + IN_DIM * OUT_PAD * w_itemsize     # fused weight (loaded once)
        + OUT_PAD * 4                       # fused bias
        + padded_B * OUT_PAD * 4            # output
    )

    # VMEM budget: double-buffered x tile dominates; fused weights are ~0.5 MB.
    vmem_bytes = (
        2 * tb * IN_DIM * x_itemsize
        + 2 * IN_DIM * OUT_PAD * w_itemsize
        + 2 * OUT_PAD * 4
        + 2 * tb * OUT_PAD * 4
    )
    vmem_limit = int(min(64 << 20, max(2 * vmem_bytes, 16 << 20)))

    out_padded = pl.pallas_call(
        fused_mlp_kernel,
        out_shape=jax.ShapeDtypeStruct((padded_B, OUT_PAD), jnp.float32),
        grid=grid,
        in_specs=[
            # x: one batch tile per grid step.
            pl.BlockSpec((tb, IN_DIM), lambda i: (i, 0)),
            # fused weight / bias: constant block index -> DMA'd once,
            # VMEM-resident across all batch tiles.
            pl.BlockSpec((IN_DIM, OUT_PAD), lambda i: (0, 0)),
            pl.BlockSpec((1, OUT_PAD), lambda i: (0, 0)),
        ],
        out_specs=pl.BlockSpec((tb, OUT_PAD), lambda i: (i, 0)),
        compiler_params=pltpu.CompilerParams(
            dimension_semantics=("parallel",),
            vmem_limit_bytes=vmem_limit,
        ),
        cost_estimate=pl.CostEstimate(
            flops=flops, transcendentals=0, bytes_accessed=bytes_accessed),
    )(xp, wc, bc)

    if return_padded:
        return out_padded
    return out_padded[:B, :OUT_DIM]


def pack_params(w1, b1, w2, b2, weight_dtype=jnp.float32):
    """Fold the two activation-free Linear layers into one affine layer and
    pad the output dim to a lane multiple.

    w1: [1000, 500], b1: [500], w2: [500, 100], b2: [100]  (already [in, out]).
    Returns wc: [1000, 128] (weight_dtype), bc: [1, 128] (f32).
    Zero-padding of the extra output columns is exact.
    """
    w1 = w1.astype(jnp.float32)
    b1 = b1.astype(jnp.float32)
    w2 = w2.astype(jnp.float32)
    b2 = b2.astype(jnp.float32)
    wc = w1 @ w2                # [1000, 100], folded in f32
    bc = b1 @ w2 + b2           # [100]
    wcp = jnp.zeros((IN_DIM, OUT_PAD), weight_dtype).at[:, :OUT_DIM].set(
        wc.astype(weight_dtype))
    bcp = jnp.zeros((1, OUT_PAD), jnp.float32).at[0, :OUT_DIM].set(bc)
    return wcp, bcp


def init_raw_params(key):
    """torch.nn.Linear default init (uniform(-1/sqrt(fan_in), 1/sqrt(fan_in))),
    stored as [in, out] (W^T relative to torch's [out, in])."""
    k1, k2, k3, k4 = jax.random.split(key, 4)
    bound1 = 1.0 / jnp.sqrt(IN_DIM)
    bound2 = 1.0 / jnp.sqrt(HID_DIM)
    w1 = jax.random.uniform(k1, (IN_DIM, HID_DIM), jnp.float32, -bound1, bound1)
    b1 = jax.random.uniform(k2, (HID_DIM,), jnp.float32, -bound1, bound1)
    w2 = jax.random.uniform(k3, (HID_DIM, OUT_DIM), jnp.float32, -bound2, bound2)
    b2 = jax.random.uniform(k4, (OUT_DIM,), jnp.float32, -bound2, bound2)
    return w1, b1, w2, b2


if __name__ == "__main__":
    key = jax.random.PRNGKey(0)
    k_params, k_x = jax.random.split(key)
    w1, b1, w2, b2 = init_raw_params(k_params)

    # --- small-batch check against the unfused two-matmul reference ----------
    wc, bc = pack_params(w1, b1, w2, b2, jnp.float32)
    B = 8
    x = jax.random.normal(k_x, (B, IN_DIM), jnp.float32)
    out = jax.block_until_ready(simple_model_forward(x, wc, bc))
    ref = (x @ w1 + b1) @ w2 + b2
    assert out.shape == (B, OUT_DIM)
    # Folding changes the f32 rounding order slightly (~1e-6 rel).
    assert jnp.allclose(out, ref, atol=1e-3, rtol=1e-3)

    # --- larger batch: >= 2 grid steps (v7x megacore), VMEM-resident weights -
    B2 = 256
    x2 = jax.random.normal(k_x, (B2, IN_DIM), jnp.float32)
    out2 = jax.block_until_ready(simple_model_forward(x2, wc, bc))
    ref2 = (x2 @ w1 + b1) @ w2 + b2
    assert out2.shape == (B2, OUT_DIM)
    assert jnp.allclose(out2, ref2, atol=1e-3, rtol=1e-3)

    # --- optional bf16 weight path: x stays f32 in HBM, cast happens in-kernel
    wc_bf, bc_bf = pack_params(w1, b1, w2, b2, jnp.bfloat16)
    out_bf = jax.block_until_ready(simple_model_forward(x2, wc_bf, bc_bf))
    assert jnp.allclose(out_bf, ref2, atol=5e-2, rtol=5e-2)

    print("KERNEL_OK")
</pallas_src>

<mosaic_0001>
module attributes {stable_mosaic.version = 11 : i64} {
  func.func @fused_mlp_kernel(%arg0: i32, %arg1: memref<8x1000xf32, #tpu.memory_space<vmem>>, %arg2: memref<1000x128xf32, #tpu.memory_space<vmem>>, %arg3: memref<1x128xf32, #tpu.memory_space<vmem>>, %arg4: memref<8x128xf32, #tpu.memory_space<vmem>>) attributes {dimension_semantics = [#tpu.dimension_semantics<parallel>], iteration_bounds = array<i64: 1>, scalar_prefetch = 0 : i64, scratch_operands = 0 : i64, tpu.core_type = #tpu.core_type<tc>, window_params = [{transform_indices = @transform_0, window_bounds = array<i64: 8, 1000>}, {pipeline_mode = #tpu.pipeline_mode<synchronous>, transform_indices = @transform_1, window_bounds = array<i64: 1000, 128>}, {pipeline_mode = #tpu.pipeline_mode<synchronous>, transform_indices = @transform_2, window_bounds = array<i64: 1, 128>}, {transform_indices = @transform_3, window_bounds = array<i64: 8, 128>}]} {
    %c0 = arith.constant 0 : index
    %c0_0 = arith.constant 0 : index
    %0 = vector.load %arg1[%c0, %c0_0] : memref<8x1000xf32, #tpu.memory_space<vmem>>, vector<8x1000xf32>
    %c0_1 = arith.constant 0 : index
    %c0_2 = arith.constant 0 : index
    %1 = vector.load %arg2[%c0_1, %c0_2] : memref<1000x128xf32, #tpu.memory_space<vmem>>, vector<1000x128xf32>
    %cst = arith.constant dense<0.000000e+00> : vector<8x128xf32>
    %2 = tpu.matmul %0, %1, %cst {dimension_numbers = #tpu.dot_dimension_numbers<[1], [0], [0], [1], [0, 0, 1, 1], [], []>} : vector<8x1000xf32>, vector<1000x128xf32>, vector<8x128xf32> -> vector<8x128xf32>
    %c0_3 = arith.constant 0 : index
    %c0_4 = arith.constant 0 : index
    %3 = vector.load %arg3[%c0_3, %c0_4] : memref<1x128xf32, #tpu.memory_space<vmem>>, vector<1x128xf32>
    %4 = vector.broadcast %3 : vector<1x128xf32> to vector<8x128xf32>
    %5 = arith.addf %2, %4 : vector<8x128xf32>
    %c0_5 = arith.constant 0 : index
    %c0_6 = arith.constant 0 : index
    %6 = vector.load %arg4[%c0_5, %c0_6] : memref<8x128xf32, #tpu.memory_space<vmem>>, vector<8x128xf32>
    tpu.vector_store %arg4[%c0_5, %c0_6], %5 {strides = array<i32>} : memref<8x128xf32, #tpu.memory_space<vmem>>, vector<8x128xf32>,
    return
  }
  func.func @transform_0(%arg0: i32) -> (i32, i32) {
    %c0_i32 = arith.constant 0 : i32
    %c0_i32_0 = arith.constant 0 : i32
    return %arg0, %c0_i32 : i32, i32
  }
  func.func @transform_1(%arg0: i32) -> (i32, i32) {
    %c0_i32 = arith.constant 0 : i32
    %c0_i32_0 = arith.constant 0 : i32
    %c0_i32_1 = arith.constant 0 : i32
    return %c0_i32, %c0_i32_0 : i32, i32
  }
  func.func @transform_2(%arg0: i32) -> (i32, i32) {
    %c0_i32 = arith.constant 0 : i32
    %c0_i32_0 = arith.constant 0 : i32
    %c0_i32_1 = arith.constant 0 : i32
    return %c0_i32, %c0_i32_0 : i32, i32
  }
  func.func @transform_3(%arg0: i32) -> (i32, i32) {
    %c0_i32 = arith.constant 0 : i32
    %c0_i32_0 = arith.constant 0 : i32
    return %arg0, %c0_i32 : i32, i32
  }
}

</mosaic_0001>

<llo_original>
// kernel: tpu_custom_call.1
$region0: #{tpu_custom_call.1}
  #allocation0 [shape = 'u32[]', space=smem, size = 0x4, offset = 0x4, fixed_abs, tag = 'smem constant byte address 0x4 - core index']
  #allocation1 [shape = 'u32[72,128]{1,0:T(1,128)}', space=vmem, size = 0x9000, scoped, tag = 'internal scratch']
  %s0 = inlined_call_operand.hbm [shape: f32[8,1000], index: 0, kind: input, shape index: {}]
  %s1 = inlined_call_operand.hbm [shape: f32[1000,128], index: 1, kind: input, shape index: {}]
  %s2 = inlined_call_operand.vmem [shape: f32[1,128], index: 2, kind: input, shape index: {}]
  %s3 = inlined_call_operand.hbm [shape: f32[8,128], index: 3, kind: output, shape index: {}]
  %s4 = sld [smem:[#allocation0]]
  $region30: #{tpu_custom_call.1} parent=0
    _
  %s6 = ssub.s32 1, %s4
  %s7 = scalar_select 0, %s6, %s4
  $region1: #{tpu_custom_call.1} parent=0
    #allocation2 [shape = 'u8[32768]{0}', space=vmem, size = 0x8000, scoped, tag = 'input window, operand 0, single buffered']
    #allocation3 [shape = 's32[1]{0}', space=sflag, size = 0x4, scoped, tag = 'scoped memory for tpu_custom_call.1']
    #allocation4 [shape = 's32[1]{0}', space=sflag, size = 0x4, scoped, tag = 'scoped memory for tpu_custom_call.1']
    #allocation5 [shape = 'u8[512000]{0}', space=vmem, size = 0x7d000, scoped, tag = 'input window, operand 1, single buffered']
    #allocation6 [shape = 's32[1]{0}', space=sflag, size = 0x4, scoped, tag = 'scoped memory for tpu_custom_call.1']
    #allocation7 [shape = 'u8[4096]{0}', space=vmem, size = 0x1000, scoped, tag = 'output window, operand 0, single buffered']
    %8 = vsyncpa [#allocation3], 0
    %9 = vsyncpa [#allocation6], 0
    %10 = vsyncpa [#allocation4], 0
    // Predicated region
    $region2: #{tpu_custom_call.1} parent=1 // pred_check
      _
    $region3: #{tpu_custom_call.1} parent=1 // pred_check_branch
      %12 = sbr.rel (0) target = $region5
    $region4: #{tpu_custom_call.1} parent=1 // pred_region
      %14 = vsyncadd [#allocation3], 0
      %s16 = sshll.u32 %s0, 4
      %s17 = int_to_ptr.hbm [resolvable:$true] %s16
      %s18 = sshll.u32 [#allocation2], 4
      %s19 = int_to_ptr.vmem [resolvable:$true] %s18
      %21 = dma.hbm_to_vmem [thread:$0]  %s17, 1024, %s19, [#allocation3]
    $region5: #{tpu_custom_call.1} parent=1 // pred_fallthru
      _
    // Predicated region
    $region6: #{tpu_custom_call.1} parent=1 // pred_check
      _
    $region7: #{tpu_custom_call.1} parent=1 // pred_check_branch
      %23 = sbr.rel (0) target = $region9
    $region8: #{tpu_custom_call.1} parent=1 // pred_region
      %25 = vsyncadd [#allocation6], 0
      %s26 = sshll.u32 %s1, 4
      %s27 = int_to_ptr.hbm [resolvable:$true] %s26
      %s28 = sshll.u32 [#allocation5], 4
      %s29 = int_to_ptr.vmem [resolvable:$true] %s28
      %34 = dma.hbm_to_vmem [thread:$0]  %s27, 16000, %s29, [#allocation6], 128, 128, 8
    $region9: #{tpu_custom_call.1} parent=1 // pred_fallthru
      _
    // Predicated region
    $region10: #{tpu_custom_call.1} parent=1 // pred_check
      _
    $region11: #{tpu_custom_call.1} parent=1 // pred_check_branch
      %36 = sbr.rel (0) target = $region13
    $region12: #{tpu_custom_call.1} parent=1 // pred_region
      _
    $region13: #{tpu_custom_call.1} parent=1 // pred_fallthru
      _
    // Predicated region
    $region14: #{tpu_custom_call.1} parent=1 // pred_check
      _
    $region15: #{tpu_custom_call.1} parent=1 // pred_check_branch
      %38 = sbr.rel (0) target = $region17
    $region16: #{tpu_custom_call.1} parent=1 // pred_region
      %40 = dma.done [#allocation3], 1024
    $region17: #{tpu_custom_call.1} parent=1 // pred_fallthru
      _
    // Predicated region
    $region18: #{tpu_custom_call.1} parent=1 // pred_check
      _
    $region19: #{tpu_custom_call.1} parent=1 // pred_check_branch
      %42 = sbr.rel (0) target = $region21
    $region20: #{tpu_custom_call.1} parent=1 // pred_region
      %44 = dma.done [#allocation6], 16000
    $region21: #{tpu_custom_call.1} parent=1 // pred_fallthru
      _
    %v45 = vld [vmem:[#allocation2] sm:$0xff]
    %v46 = vld [vmem:[#allocation2 + $0x8] sm:$0xff]
    %v47 = vld [vmem:[#allocation2 + $0x10] sm:$0xff]
    %v48 = vld [vmem:[#allocation2 + $0x18] sm:$0xff]
    %v49 = vld [vmem:[#allocation2 + $0x20] sm:$0xff]
    %v50 = vld [vmem:[#allocation2 + $0x28] sm:$0xff]
    %v51 = vld [vmem:[#allocation2 + $0x30] sm:$0xff]
    %v52 = vld [vmem:[#allocation2 + $0x38] sm:$0xff]
    %v53 = vld [vmem:[#allocation5] sm:$0xff]
    %v54 = vld [vmem:[#allocation5 + $0x8] sm:$0xff]
    %v55 = vld [vmem:[#allocation5 + $0x10] sm:$0xff]
    %v56 = vld [vmem:[#allocation5 + $0x18] sm:$0xff]
    %v57 = vld [vmem:[#allocation5 + $0x20] sm:$0xff]
    %v58 = vld [vmem:[#allocation5 + $0x28] sm:$0xff]
    %v59 = vld [vmem:[#allocation5 + $0x30] sm:$0xff]
    %v60 = vld [vmem:[#allocation5 + $0x38] sm:$0xff]
    %v61 = vld [vmem:[#allocation5 + $0x40] sm:$0xff]
    %v62 = vld [vmem:[#allocation5 + $0x48] sm:$0xff]
    %v63 = vld [vmem:[#allocation5 + $0x50] sm:$0xff]
    %v64 = vld [vmem:[#allocation5 + $0x58] sm:$0xff]
    %v65 = vld [vmem:[#allocation5 + $0x60] sm:$0xff]
    %v66 = vld [vmem:[#allocation5 + $0x68] sm:$0xff]
    %v67 = vld [vmem:[#allocation5 + $0x70] sm:$0xff]
    %v68 = vld [vmem:[#allocation5 + $0x78] sm:$0xff]
    %v69 = vld [vmem:[#allocation5 + $0x80] sm:$0xff]
    %v70 = vld [vmem:[#allocation5 + $0x88] sm:$0xff]
    %v71 = vld [vmem:[#allocation5 + $0x90] sm:$0xff]
    %v72 = vld [vmem:[#allocation5 + $0x98] sm:$0xff]
    %v73 = vld [vmem:[#allocation5 + $0xa0] sm:$0xff]
    %v74 = vld [vmem:[#allocation5 + $0xa8] sm:$0xff]
    %v75 = vld [vmem:[#allocation5 + $0xb0] sm:$0xff]
    %v76 = vld [vmem:[#allocation5 + $0xb8] sm:$0xff]
    %v77 = vld [vmem:[#allocation5 + $0xc0] sm:$0xff]
    %v78 = vld [vmem:[#allocation5 + $0xc8] sm:$0xff]
    %v79 = vld [vmem:[#allocation5 + $0xd0] sm:$0xff]
    %v80 = vld [vmem:[#allocation5 + $0xd8] sm:$0xff]
    %v81 = vld [vmem:[#allocation5 + $0xe0] sm:$0xff]
    %v82 = vld [vmem:[#allocation5 + $0xe8] sm:$0xff]
    %v83 = vld [vmem:[#allocation5 + $0xf0] sm:$0xff]
    %v84 = vld [vmem:[#allocation5 + $0xf8] sm:$0xff]
    %v85 = vld [vmem:[#allocation5 + $0x100] sm:$0xff]
    %v86 = vld [vmem:[#allocation5 + $0x108] sm:$0xff]
    %v87 = vld [vmem:[#allocation5 + $0x110] sm:$0xff]
    %v88 = vld [vmem:[#allocation5 + $0x118] sm:$0xff]
    %v89 = vld [vmem:[#allocation5 + $0x120] sm:$0xff]
    %v90 = vld [vmem:[#allocation5 + $0x128] sm:$0xff]
    %v91 = vld [vmem:[#allocation5 + $0x130] sm:$0xff]
    %v92 = vld [vmem:[#allocation5 + $0x138] sm:$0xff]
    %v93 = vld [vmem:[#allocation5 + $0x140] sm:$0xff]
    %v94 = vld [vmem:[#allocation5 + $0x148] sm:$0xff]
    %v95 = vld [vmem:[#allocation5 + $0x150] sm:$0xff]
    %v96 = vld [vmem:[#allocation5 + $0x158] sm:$0xff]
    %v97 = vld [vmem:[#allocation5 + $0x160] sm:$0xff]
    %v98 = vld [vmem:[#allocation5 + $0x168] sm:$0xff]
    %v99 = vld [vmem:[#allocation5 + $0x170] sm:$0xff]
    %v100 = vld [vmem:[#allocation5 + $0x178] sm:$0xff]
    %v101 = vld [vmem:[#allocation5 + $0x180] sm:$0xff]
    %v102 = vld [vmem:[#allocation5 + $0x188] sm:$0xff]
    %v103 = vld [vmem:[#allocation5 + $0x190] sm:$0xff]
    %v104 = vld [vmem:[#allocation5 + $0x198] sm:$0xff]
    %v105 = vld [vmem:[#allocation5 + $0x1a0] sm:$0xff]
    %v106 = vld [vmem:[#allocation5 + $0x1a8] sm:$0xff]
    %v107 = vld [vmem:[#allocation5 + $0x1b0] sm:$0xff]
    %v108 = vld [vmem:[#allocation5 + $0x1b8] sm:$0xff]
    %v109 = vld [vmem:[#allocation5 + $0x1c0] sm:$0xff]
    %v110 = vld [vmem:[#allocation5 + $0x1c8] sm:$0xff]
    %v111 = vld [vmem:[#allocation5 + $0x1d0] sm:$0xff]
    %v112 = vld [vmem:[#allocation5 + $0x1d8] sm:$0xff]
    %v113 = vld [vmem:[#allocation5 + $0x1e0] sm:$0xff]
    %v114 = vld [vmem:[#allocation5 + $0x1e8] sm:$0xff]
    %v115 = vld [vmem:[#allocation5 + $0x1f0] sm:$0xff]
    %v116 = vld [vmem:[#allocation5 + $0x1f8] sm:$0xff]
    %v117 = vld [vmem:[#allocation5 + $0x200] sm:$0xff]
    %v118 = vld [vmem:[#allocation5 + $0x208] sm:$0xff]
    %v119 = vld [vmem:[#allocation5 + $0x210] sm:$0xff]
    %v120 = vld [vmem:[#allocation5 + $0x218] sm:$0xff]
    %v121 = vld [vmem:[#allocation5 + $0x220] sm:$0xff]
    %v122 = vld [vmem:[#allocation5 + $0x228] sm:$0xff]
    %v123 = vld [vmem:[#allocation5 + $0x230] sm:$0xff]
    %v124 = vld [vmem:[#allocation5 + $0x238] sm:$0xff]
    %v125 = vld [vmem:[#allocation5 + $0x240] sm:$0xff]
    %v126 = vld [vmem:[#allocation5 + $0x248] sm:$0xff]
    %v127 = vld [vmem:[#allocation5 + $0x250] sm:$0xff]
    %v128 = vld [vmem:[#allocation5 + $0x258] sm:$0xff]
    %v129 = vld [vmem:[#allocation5 + $0x260] sm:$0xff]
    %v130 = vld [vmem:[#allocation5 + $0x268] sm:$0xff]
    %v131 = vld [vmem:[#allocation5 + $0x270] sm:$0xff]
    %v132 = vld [vmem:[#allocation5 + $0x278] sm:$0xff]
    %v133 = vld [vmem:[#allocation5 + $0x280] sm:$0xff]
    %v134 = vld [vmem:[#allocation5 + $0x288] sm:$0xff]
    %v135 = vld [vmem:[#allocation5 + $0x290] sm:$0xff]
    %v136 = vld [vmem:[#allocation5 + $0x298] sm:$0xff]
    %v137 = vld [vmem:[#allocation5 + $0x2a0] sm:$0xff]
    %v138 = vld [vmem:[#allocation5 + $0x2a8] sm:$0xff]
    %v139 = vld [vmem:[#allocation5 + $0x2b0] sm:$0xff]
    %v140 = vld [vmem:[#allocation5 + $0x2b8] sm:$0xff]
    %v141 = vld [vmem:[#allocation5 + $0x2c0] sm:$0xff]
    %v142 = vld [vmem:[#allocation5 + $0x2c8] sm:$0xff]
    %v143 = vld [vmem:[#allocation5 + $0x2d0] sm:$0xff]
    %v144 = vld [vmem:[#allocation5 + $0x2d8] sm:$0xff]
    %v145 = vld [vmem:[#allocation5 + $0x2e0] sm:$0xff]
    %v146 = vld [vmem:[#allocation5 + $0x2e8] sm:$0xff]
    %v147 = vld [vmem:[#allocation5 + $0x2f0] sm:$0xff]
    %v148 = vld [vmem:[#allocation5 + $0x2f8] sm:$0xff]
    %v149 = vld [vmem:[#allocation5 + $0x300] sm:$0xff]
    %v150 = vld [vmem:[#allocation5 + $0x308] sm:$0xff]
    %v151 = vld [vmem:[#allocation5 + $0x310] sm:$0xff]
    %v152 = vld [vmem:[#allocation5 + $0x318] sm:$0xff]
    %v153 = vld [vmem:[#allocation5 + $0x320] sm:$0xff]
    %v154 = vld [vmem:[#allocation5 + $0x328] sm:$0xff]
    %v155 = vld [vmem:[#allocation5 + $0x330] sm:$0xff]
    %v156 = vld [vmem:[#allocation5 + $0x338] sm:$0xff]
    %v157 = vld [vmem:[#allocation5 + $0x340] sm:$0xff]
    %v158 = vld [vmem:[#allocation5 + $0x348] sm:$0xff]
    %v159 = vld [vmem:[#allocation5 + $0x350] sm:$0xff]
    %v160 = vld [vmem:[#allocation5 + $0x358] sm:$0xff]
    %v161 = vld [vmem:[#allocation5 + $0x360] sm:$0xff]
    %v162 = vld [vmem:[#allocation5 + $0x368] sm:$0xff]
    %v163 = vld [vmem:[#allocation5 + $0x370] sm:$0xff]
    %v164 = vld [vmem:[#allocation5 + $0x378] sm:$0xff]
    %v165 = vld [vmem:[#allocation5 + $0x380] sm:$0xff]
    %v166 = vld [vmem:[#allocation5 + $0x388] sm:$0xff]
    %v167 = vld [vmem:[#allocation5 + $0x390] sm:$0xff]
    %v168 = vld [vmem:[#allocation5 + $0x398] sm:$0xff]
    %v169 = vld [vmem:[#allocation5 + $0x3a0] sm:$0xff]
    %v170 = vld [vmem:[#allocation5 + $0x3a8] sm:$0xff]
    %v171 = vld [vmem:[#allocation5 + $0x3b0] sm:$0xff]
    %v172 = vld [vmem:[#allocation5 + $0x3b8] sm:$0xff]
    %v173 = vld [vmem:[#allocation5 + $0x3c0] sm:$0xff]
    %v174 = vld [vmem:[#allocation5 + $0x3c8] sm:$0xff]
    %v175 = vld [vmem:[#allocation5 + $0x3d0] sm:$0xff]
    %v176 = vld [vmem:[#allocation5 + $0x3d8] sm:$0xff]
    %v177 = vld [vmem:[#allocation5 + $0x3e0] sm:$0xff]
    %v178 = vld [vmem:[%s2] sm:$0x1]
    %v180 = vperm.slane %v178, 0
    %vm182 = vcmask 850944
    %v184 = vsel %vm182, %v52, 0
    %186 = vmatpush.msra.mxu0 %v68
    %187 = vmatpush.msra.mxu0 %v67
    %188 = vmatpush.msra.mxu0 %v66
    %189 = vmatpush.msra.mxu0 %v65
    %190 = vmatpush.msra.mxu0 %v64
    %191 = vmatpush.msra.mxu0 %v63
    %192 = vmatpush.msra.mxu0 %v62
    %193 = vmatpush.msra.mxu0 %v61
    %194 = vmatpush.msra.mxu0 %v60
    %195 = vmatpush.msra.mxu0 %v59
    %196 = vmatpush.msra.mxu0 %v58
    %197 = vmatpush.msra.mxu0 %v57
    %198 = vmatpush.msra.mxu0 %v56
    %199 = vmatpush.msra.mxu0 %v55
    %200 = vmatpush.msra.mxu0 %v54
    %201 = vmatpush.msra.mxu0 %v53
    %202 = vmatmul.f32.gmra.mxu0 %v45
    %v203 = vpop.f32.mrf.mxu0
    %v204 = vadd.f32 %v180, %v203
    %205 = vdwg.mxu0
    %206 = vmatpush.msra.mxu0 %v84
    %207 = vmatpush.msra.mxu0 %v83
    %208 = vmatpush.msra.mxu0 %v82
    %209 = vmatpush.msra.mxu0 %v81
    %210 = vmatpush.msra.mxu0 %v80
    %211 = vmatpush.msra.mxu0 %v79
    %212 = vmatpush.msra.mxu0 %v78
    %213 = vmatpush.msra.mxu0 %v77
    %214 = vmatpush.msra.mxu0 %v76
    %215 = vmatpush.msra.mxu0 %v75
    %216 = vmatpush.msra.mxu0 %v74
    %217 = vmatpush.msra.mxu0 %v73
    %218 = vmatpush.msra.mxu0 %v72
    %219 = vmatpush.msra.mxu0 %v71
    %220 = vmatpush.msra.mxu0 %v70
    %221 = vmatpush.msra.mxu0 %v69
    %222 = vmatmul.f32.gmra.mxu0 %v46
    %v223 = vpop.f32.mrf.mxu0
    %v224 = vadd.f32 %v204, %v223
    %225 = vdwg.mxu0
    %226 = vmatpush.msra.mxu0 %v100
    %227 = vmatpush.msra.mxu0 %v99
    %228 = vmatpush.msra.mxu0 %v98
    %229 = vmatpush.msra.mxu0 %v97
    %230 = vmatpush.msra.mxu0 %v96
    %231 = vmatpush.msra.mxu0 %v95
    %232 = vmatpush.msra.mxu0 %v94
    %233 = vmatpush.msra.mxu0 %v93
    %234 = vmatpush.msra.mxu0 %v92
    %235 = vmatpush.msra.mxu0 %v91
    %236 = vmatpush.msra.mxu0 %v90
    %237 = vmatpush.msra.mxu0 %v89
    %238 = vmatpush.msra.mxu0 %v88
    %239 = vmatpush.msra.mxu0 %v87
    %240 = vmatpush.msra.mxu0 %v86
    %241 = vmatpush.msra.mxu0 %v85
    %242 = vmatmul.f32.gmra.mxu0 %v47
    %v243 = vpop.f32.mrf.mxu0
    %v244 = vadd.f32 %v224, %v243
    %245 = vdwg.mxu0
    %246 = vmatpush.msra.mxu0 %v116
    %247 = vmatpush.msra.mxu0 %v115
    %248 = vmatpush.msra.mxu0 %v114
    %249 = vmatpush.msra.mxu0 %v113
    %250 = vmatpush.msra.mxu0 %v112
    %251 = vmatpush.msra.mxu0 %v111
    %252 = vmatpush.msra.mxu0 %v110
    %253 = vmatpush.msra.mxu0 %v109
    %254 = vmatpush.msra.mxu0 %v108
    %255 = vmatpush.msra.mxu0 %v107
    %256 = vmatpush.msra.mxu0 %v106
    %257 = vmatpush.msra.mxu0 %v105
    %258 = vmatpush.msra.mxu0 %v104
    %259 = vmatpush.msra.mxu0 %v103
    %260 = vmatpush.msra.mxu0 %v102
    %261 = vmatpush.msra.mxu0 %v101
    %262 = vmatmul.f32.gmra.mxu0 %v48
    %v263 = vpop.f32.mrf.mxu0
    %v264 = vadd.f32 %v244, %v263
    %265 = vdwg.mxu0
    %266 = vmatpush.msra.mxu0 %v132
    %267 = vmatpush.msra.mxu0 %v131
    %268 = vmatpush.msra.mxu0 %v130
    %269 = vmatpush.msra.mxu0 %v129
    %270 = vmatpush.msra.mxu0 %v128
    %271 = vmatpush.msra.mxu0 %v127
    %272 = vmatpush.msra.mxu0 %v126
    %273 = vmatpush.msra.mxu0 %v125
    %274 = vmatpush.msra.mxu0 %v124
    %275 = vmatpush.msra.mxu0 %v123
    %276 = vmatpush.msra.mxu0 %v122
    %277 = vmatpush.msra.mxu0 %v121
    %278 = vmatpush.msra.mxu0 %v120
    %279 = vmatpush.msra.mxu0 %v119
    %280 = vmatpush.msra.mxu0 %v118
    %281 = vmatpush.msra.mxu0 %v117
    %282 = vmatmul.f32.gmra.mxu0 %v49
    %v283 = vpop.f32.mrf.mxu0
    %v284 = vadd.f32 %v264, %v283
    %285 = vdwg.mxu0
    %286 = vmatpush.msra.mxu0 %v148
    %287 = vmatpush.msra.mxu0 %v147
    %288 = vmatpush.msra.mxu0 %v146
    %289 = vmatpush.msra.mxu0 %v145
    %290 = vmatpush.msra.mxu0 %v144
    %291 = vmatpush.msra.mxu0 %v143
    %292 = vmatpush.msra.mxu0 %v142
    %293 = vmatpush.msra.mxu0 %v141
    %294 = vmatpush.msra.mxu0 %v140
    %295 = vmatpush.msra.mxu0 %v139
    %296 = vmatpush.msra.mxu0 %v138
    %297 = vmatpush.msra.mxu0 %v137
    %298 = vmatpush.msra.mxu0 %v136
    %299 = vmatpush.msra.mxu0 %v135
    %300 = vmatpush.msra.mxu0 %v134
    %301 = vmatpush.msra.mxu0 %v133
    %302 = vmatmul.f32.gmra.mxu0 %v50
    %v303 = vpop.f32.mrf.mxu0
    %v304 = vadd.f32 %v284, %v303
    %305 = vdwg.mxu0
    %306 = vmatpush.msra.mxu0 %v164
    %307 = vmatpush.msra.mxu0 %v163
    %308 = vmatpush.msra.mxu0 %v162
    %309 = vmatpush.msra.mxu0 %v161
    %310 = vmatpush.msra.mxu0 %v160
    %311 = vmatpush.msra.mxu0 %v159
    %312 = vmatpush.msra.mxu0 %v158
    %313 = vmatpush.msra.mxu0 %v157
    %314 = vmatpush.msra.mxu0 %v156
    %315 = vmatpush.msra.mxu0 %v155
    %316 = vmatpush.msra.mxu0 %v154
    %317 = vmatpush.msra.mxu0 %v153
    %318 = vmatpush.msra.mxu0 %v152
    %319 = vmatpush.msra.mxu0 %v151
    %320 = vmatpush.msra.mxu0 %v150
    %321 = vmatpush.msra.mxu0 %v149
    %322 = vmatmul.f32.gmra.mxu0 %v51
    %v323 = vpop.f32.mrf.mxu0
    %v324 = vadd.f32 %v304, %v323
    %325 = vdwg.mxu0
    %326 = vmatpush.msra.mxu0 0.0
    %327 = vmatpush.msra.mxu0 0.0
    %328 = vmatpush.msra.mxu0 0.0
    %329 = vmatpush.msra.mxu0 %v177
    %330 = vmatpush.msra.mxu0 %v176
    %331 = vmatpush.msra.mxu0 %v175
    %332 = vmatpush.msra.mxu0 %v174
    %333 = vmatpush.msra.mxu0 %v173
    %334 = vmatpush.msra.mxu0 %v172
    %335 = vmatpush.msra.mxu0 %v171
    %336 = vmatpush.msra.mxu0 %v170
    %337 = vmatpush.msra.mxu0 %v169
    %338 = vmatpush.msra.mxu0 %v168
    %339 = vmatpush.msra.mxu0 %v167
    %340 = vmatpush.msra.mxu0 %v166
    %341 = vmatpush.msra.mxu0 %v165
    %342 = vmatmul.f32.gmra.mxu0 %v184
    %v343 = vpop.f32.mrf.mxu0
    %v344 = vadd.f32 %v324, %v343
    %345 = vdwg.mxu0
    %346 = vst [vmem:[#allocation7] sm:$0xff] %v344
    // Predicated region
    $region22: #{tpu_custom_call.1} parent=1 // pred_check
      _
    $region23: #{tpu_custom_call.1} parent=1 // pred_check_branch
      %348 = sbr.rel (0) target = $region25
    $region24: #{tpu_custom_call.1} parent=1 // pred_region
      %350 = vsyncadd [#allocation4], 0
      %s352 = sshll.u32 [#allocation7], 4
      %s353 = int_to_ptr.vmem [resolvable:$true] %s352
      %s354 = sshll.u32 %s3, 4
      %s355 = int_to_ptr.hbm [resolvable:$true] %s354
      %357 = dma.vmem_to_hbm [thread:$0]  %s353, 128, %s355, [#allocation4]
    $region25: #{tpu_custom_call.1} parent=1 // pred_fallthru
      _
    // Predicated region
    $region26: #{tpu_custom_call.1} parent=1 // pred_check
      _
    $region27: #{tpu_custom_call.1} parent=1 // pred_check_branch
      %359 = sbr.rel (0) target = $region29
    $region28: #{tpu_custom_call.1} parent=1 // pred_region
      %361 = dma.done [#allocation4], 128
    $region29: #{tpu_custom_call.1} parent=1 // pred_fallthru
      _
    %362 = vsyncpa [#allocation3], 1
    %363 = vsyncpa [#allocation6], 1
    %364 = vsyncpa [#allocation4], 1

</llo_original>
